<compile_context>
chip_gen: v6e
topology: v6e:2x2x1
jax: 0.10.0
libtpu: 0.0.40
codegen_flags: <defaults>
</compile_context>

<pallas_src>
import jax
import jax.numpy as jnp
from jax.experimental import pallas as pl
from jax.experimental.pallas import tpu as pltpu


def _round_up(a: int, b: int) -> int:
    return (a + b - 1) // b * b


def resblock_kernel(x_ref, w_ref, b_ref, o_ref):
    x = x_ref[...]                      # (bn, C) f32 -- residual kept in f32
    cdt = w_ref.dtype                   # MXU operand dtype (f32 small C, bf16 large C)

    # Linear 1 + LeakyReLU(0.1)  (f32 accumulation on the MXU)
    h = jnp.dot(x.astype(cdt), w_ref[0], preferred_element_type=jnp.float32) + b_ref[0]
    h = jnp.maximum(h, 0.1 * h)
    # Linear 2 + LeakyReLU(0.1)
    h = jnp.dot(h.astype(cdt), w_ref[1], preferred_element_type=jnp.float32) + b_ref[1]
    h = jnp.maximum(h, 0.1 * h)
    # Linear 3
    h = jnp.dot(h.astype(cdt), w_ref[2], preferred_element_type=jnp.float32) + b_ref[2]

    # residual add + ReLU join
    o_ref[...] = jnp.maximum(h + x, 0.0).astype(o_ref.dtype)


def pack_resblock_params(w1, b1, w2, b2, w3, b3, *, weight_dtype=None):
    """Pre-pack parameters ONCE, outside the per-call hot path.

    Weights are stored as (C_in, C_out) so y = x @ W + b.  For small C the kernel is
    HBM-bound and the MXU idle, so f32 weights cost nothing; bf16 only pays for large C.
    Returns (w_packed (3, C, C), b_packed (3, 1, C) f32).
    """
    ch = w1.shape[0]
    if weight_dtype is None:
        weight_dtype = jnp.float32 if ch <= 256 else jnp.bfloat16
    w = jnp.stack([w1, w2, w3]).astype(weight_dtype)
    b = jnp.stack([jnp.reshape(b1, (1, ch)),
                   jnp.reshape(b2, (1, ch)),
                   jnp.reshape(b3, (1, ch))]).astype(jnp.float32)
    return w, b


def _vmem_capacity_bytes() -> int:
    try:
        return int(pltpu.get_tpu_info().vmem_capacity_bytes)
    except Exception:
        return 64 << 20   # conservative (v7x per-TC); also a valid subset of v5e/v6e


def resblock(x, w_packed, b_packed, *, block_n=None):
    """x: (N, C) activations. w_packed: (3, C, C) as (C_in, C_out). b_packed: (3, 1, C)."""
    N, C = x.shape
    assert w_packed.shape == (3, C, C) and b_packed.shape == (3, 1, C)
    wbytes = jnp.dtype(w_packed.dtype).itemsize

    # ---- VMEM budget (generation-aware, single hedge only) ----
    vmem_cap = _vmem_capacity_bytes()
    headroom = 16 << 20          # left for XLA / neighbouring kernels
    margin = 8 << 20             # compiler internal scratch / spills
    weight_vmem = 3 * C * C * wbytes + 3 * C * 4           # single-buffered weights + f32 biases
    act_bytes_per_row = 2 * 2 * C * 4                      # x + out tiles, double-buffered, f32
    act_budget = max(vmem_cap - headroom - margin - weight_vmem, 1 << 20)

    # ---- batch tile: as large as the budget allows (roofline saturates ~512-1024 rows),
    #      but keep >= ~8 grid steps (4 per TC on v7x) so the x/out DMA stays pipelined. ----
    if block_n is None:
        bn_vmem = (act_budget // act_bytes_per_row) // 8 * 8
        bn_grid = _round_up(pl.cdiv(N, 8), 8)
        bn = max(min(int(bn_vmem), 1024, bn_grid), 8)
    else:
        bn = max(_round_up(block_n, 8), 8)
    Np = _round_up(N, bn)
    grid = (Np // bn,)

    # Activations stay unpadded in the channel dim; only pad rows when bn does not divide N.
    x_in = x.astype(jnp.float32)
    padded = Np != N
    if padded:
        x_in = jnp.pad(x_in, ((0, Np - N), (0, 0)))

    x_spec = pl.BlockSpec((bn, C), lambda i: (i, 0))          # pipelined over the grid
    w_spec = pl.BlockSpec((3, C, C), lambda i: (0, 0, 0),
                          pipeline_mode=pl.Buffered(1))       # resident, single-buffered
    b_spec = pl.BlockSpec((3, 1, C), lambda i: (0, 0, 0),
                          pipeline_mode=pl.Buffered(1))

    vmem_need = weight_vmem + bn * act_bytes_per_row
    vmem_limit = int(min(vmem_cap - headroom, max(vmem_need + margin, 32 << 20)))

    cost = pl.CostEstimate(
        flops=2 * 3 * Np * C * C,
        transcendentals=0,
        bytes_accessed=2 * Np * C * 4 + 3 * C * C * wbytes + 3 * C * 4,
    )

    out_padded = pl.pallas_call(
        resblock_kernel,
        out_shape=jax.ShapeDtypeStruct((Np, C), jnp.float32),
        grid_spec=pltpu.PrefetchScalarGridSpec(
            num_scalar_prefetch=0,
            grid=grid,
            in_specs=[x_spec, w_spec, b_spec],
            out_specs=x_spec,
        ),
        # Alias only when x_in is a fresh padded temp (each grid step reads/writes the same
        # disjoint (bn, C) block, so the alias is safe for this out_spec).
        input_output_aliases={0: 0} if padded else {},
        compiler_params=pltpu.CompilerParams(
            dimension_semantics=("parallel",),
            vmem_limit_bytes=vmem_limit,
        ),
        cost_estimate=cost,
    )(x_in, w_packed, b_packed)

    return out_padded[:N] if padded else out_padded


def resblock_ref(x, w1, b1, w2, b2, w3, b3):
    """Pure-JAX f32 reference (mirrors the PyTorch forward)."""
    def leaky(v):
        return jnp.maximum(v, 0.1 * v)
    h = leaky(x @ w1 + b1)
    h = leaky(h @ w2 + b2)
    h = h @ w3 + b3
    return jnp.maximum(h + x, 0.0)


if __name__ == "__main__":
    N, C = 512, 32  # batch x channels (ch); bn auto-sizes to 64 -> 8 pipelined grid steps
    key = jax.random.PRNGKey(0)
    kx, k1, k2, k3, k4, k5, k6 = jax.random.split(key, 7)

    x = jax.random.normal(kx, (N, C), dtype=jnp.float32)

    # Deterministic parameter init (shapes from nn.Linear(ch, ch)); stored as (C_in, C_out).
    scale = 1.0 / jnp.sqrt(C)
    w1 = jax.random.uniform(k1, (C, C), jnp.float32, -scale, scale)
    b1 = jax.random.uniform(k2, (1, C), jnp.float32, -scale, scale)
    w2 = jax.random.uniform(k3, (C, C), jnp.float32, -scale, scale)
    b2 = jax.random.uniform(k4, (1, C), jnp.float32, -scale, scale)
    w3 = jax.random.uniform(k5, (C, C), jnp.float32, -scale, scale)
    b3 = jax.random.uniform(k6, (1, C), jnp.float32, -scale, scale)

    ref = resblock_ref(x, w1, b1, w2, b2, w3, b3)

    # Default packing: f32 weights at small C (exact numerics; MXU is idle here anyway).
    wp, bp = pack_resblock_params(w1, b1, w2, b2, w3, b3)
    out = jax.block_until_ready(resblock(x, wp, bp))
    assert out.shape == (N, C)
    assert jnp.allclose(out, ref, atol=1e-4, rtol=1e-4), "f32 path mismatch vs reference"

    # bf16 MXU-operand path (what large C would use), f32 accumulation.
    wp16, bp16 = pack_resblock_params(w1, b1, w2, b2, w3, b3, weight_dtype=jnp.bfloat16)
    out16 = jax.block_until_ready(resblock(x, wp16, bp16))
    assert jnp.allclose(out16, ref, atol=5e-2, rtol=5e-2), "bf16 path mismatch vs reference"

    # Ragged batch exercises the row-padding (+ alias) path.
    out_r = jax.block_until_ready(resblock(x[:100], wp, bp))
    assert out_r.shape == (100, C)
    assert jnp.allclose(out_r, ref[:100], atol=1e-4, rtol=1e-4), "ragged-N path mismatch"

    print("KERNEL_OK")
</pallas_src>

<mosaic_0001>
module attributes {stable_mosaic.version = 11 : i64} {
  func.func @resblock_kernel(%arg0: i32, %arg1: memref<64x32xf32, #tpu.memory_space<vmem>>, %arg2: memref<3x32x32xf32, #tpu.memory_space<vmem>>, %arg3: memref<3x1x32xf32, #tpu.memory_space<vmem>>, %arg4: memref<64x32xf32, #tpu.memory_space<vmem>>) attributes {dimension_semantics = [#tpu.dimension_semantics<parallel>], iteration_bounds = array<i64: 8>, scalar_prefetch = 0 : i64, scratch_operands = 0 : i64, tpu.core_type = #tpu.core_type<tc>, window_params = [{transform_indices = @transform_0, window_bounds = array<i64: 64, 32>}, {pipeline_mode = #tpu.pipeline_mode<synchronous>, transform_indices = @transform_1, window_bounds = array<i64: 3, 32, 32>}, {pipeline_mode = #tpu.pipeline_mode<synchronous>, transform_indices = @transform_2, window_bounds = array<i64: 3, 1, 32>}, {transform_indices = @transform_3, window_bounds = array<i64: 64, 32>}]} {
    %c0 = arith.constant 0 : index
    %c0_0 = arith.constant 0 : index
    %0 = vector.load %arg1[%c0, %c0_0] : memref<64x32xf32, #tpu.memory_space<vmem>>, vector<64x32xf32>
    %c0_1 = arith.constant 0 : index
    %c0_2 = arith.constant 0 : index
    %c0_3 = arith.constant 0 : index
    %1 = vector.load %arg2[%c0_1, %c0_2, %c0_3] : memref<3x32x32xf32, #tpu.memory_space<vmem>>, vector<1x32x32xf32>
    %2 = vector.shape_cast %1 : vector<1x32x32xf32> to vector<32x32xf32>
    %cst = arith.constant dense<0.000000e+00> : vector<64x32xf32>
    %3 = tpu.matmul %0, %2, %cst {dimension_numbers = #tpu.dot_dimension_numbers<[1], [0], [0], [1], [0, 0, 1, 1], [], []>} : vector<64x32xf32>, vector<32x32xf32>, vector<64x32xf32> -> vector<64x32xf32>
    %c0_4 = arith.constant 0 : index
    %c0_5 = arith.constant 0 : index
    %c0_6 = arith.constant 0 : index
    %4 = vector.load %arg3[%c0_4, %c0_5, %c0_6] : memref<3x1x32xf32, #tpu.memory_space<vmem>>, vector<1x1x32xf32>
    %5 = vector.shape_cast %4 : vector<1x1x32xf32> to vector<1x32xf32>
    %6 = vector.broadcast %5 : vector<1x32xf32> to vector<64x32xf32>
    %7 = arith.addf %3, %6 : vector<64x32xf32>
    %cst_7 = arith.constant 1.000000e-01 : f32
    %8 = vector.broadcast %cst_7 : f32 to vector<64x32xf32>
    %9 = arith.mulf %8, %7 : vector<64x32xf32>
    %10 = arith.maximumf %7, %9 : vector<64x32xf32>
    %c1 = arith.constant 1 : index
    %c0_8 = arith.constant 0 : index
    %c0_9 = arith.constant 0 : index
    %11 = vector.load %arg2[%c1, %c0_8, %c0_9] : memref<3x32x32xf32, #tpu.memory_space<vmem>>, vector<1x32x32xf32>
    %12 = vector.shape_cast %11 : vector<1x32x32xf32> to vector<32x32xf32>
    %cst_10 = arith.constant dense<0.000000e+00> : vector<64x32xf32>
    %13 = tpu.matmul %10, %12, %cst_10 {dimension_numbers = #tpu.dot_dimension_numbers<[1], [0], [0], [1], [0, 0, 1, 1], [], []>} : vector<64x32xf32>, vector<32x32xf32>, vector<64x32xf32> -> vector<64x32xf32>
    %c1_11 = arith.constant 1 : index
    %c0_12 = arith.constant 0 : index
    %c0_13 = arith.constant 0 : index
    %14 = vector.load %arg3[%c1_11, %c0_12, %c0_13] : memref<3x1x32xf32, #tpu.memory_space<vmem>>, vector<1x1x32xf32>
    %15 = vector.shape_cast %14 : vector<1x1x32xf32> to vector<1x32xf32>
    %16 = vector.broadcast %15 : vector<1x32xf32> to vector<64x32xf32>
    %17 = arith.addf %13, %16 : vector<64x32xf32>
    %cst_14 = arith.constant 1.000000e-01 : f32
    %18 = vector.broadcast %cst_14 : f32 to vector<64x32xf32>
    %19 = arith.mulf %18, %17 : vector<64x32xf32>
    %20 = arith.maximumf %17, %19 : vector<64x32xf32>
    %c2 = arith.constant 2 : index
    %c0_15 = arith.constant 0 : index
    %c0_16 = arith.constant 0 : index
    %21 = vector.load %arg2[%c2, %c0_15, %c0_16] : memref<3x32x32xf32, #tpu.memory_space<vmem>>, vector<1x32x32xf32>
    %22 = vector.shape_cast %21 : vector<1x32x32xf32> to vector<32x32xf32>
    %cst_17 = arith.constant dense<0.000000e+00> : vector<64x32xf32>
    %23 = tpu.matmul %20, %22, %cst_17 {dimension_numbers = #tpu.dot_dimension_numbers<[1], [0], [0], [1], [0, 0, 1, 1], [], []>} : vector<64x32xf32>, vector<32x32xf32>, vector<64x32xf32> -> vector<64x32xf32>
    %c2_18 = arith.constant 2 : index
    %c0_19 = arith.constant 0 : index
    %c0_20 = arith.constant 0 : index
    %24 = vector.load %arg3[%c2_18, %c0_19, %c0_20] : memref<3x1x32xf32, #tpu.memory_space<vmem>>, vector<1x1x32xf32>
    %25 = vector.shape_cast %24 : vector<1x1x32xf32> to vector<1x32xf32>
    %26 = vector.broadcast %25 : vector<1x32xf32> to vector<64x32xf32>
    %27 = arith.addf %23, %26 : vector<64x32xf32>
    %28 = arith.addf %27, %0 : vector<64x32xf32>
    %cst_21 = arith.constant 0.000000e+00 : f32
    %29 = vector.broadcast %cst_21 : f32 to vector<64x32xf32>
    %30 = arith.maximumf %28, %29 : vector<64x32xf32>
    %c0_22 = arith.constant 0 : index
    %c0_23 = arith.constant 0 : index
    %31 = vector.load %arg4[%c0_22, %c0_23] : memref<64x32xf32, #tpu.memory_space<vmem>>, vector<64x32xf32>
    tpu.vector_store %arg4[%c0_22, %c0_23], %30 {strides = array<i32>} : memref<64x32xf32, #tpu.memory_space<vmem>>, vector<64x32xf32>,
    return
  }
  func.func @transform_0(%arg0: i32) -> (i32, i32) {
    %c0_i32 = arith.constant 0 : i32
    %c0_i32_0 = arith.constant 0 : i32
    return %arg0, %c0_i32 : i32, i32
  }
  func.func @transform_1(%arg0: i32) -> (i32, i32, i32) {
    %c0_i32 = arith.constant 0 : i32
    %c0_i32_0 = arith.constant 0 : i32
    %c0_i32_1 = arith.constant 0 : i32
    %c0_i32_2 = arith.constant 0 : i32
    return %c0_i32, %c0_i32_0, %c0_i32_1 : i32, i32, i32
  }
  func.func @transform_2(%arg0: i32) -> (i32, i32, i32) {
    %c0_i32 = arith.constant 0 : i32
    %c0_i32_0 = arith.constant 0 : i32
    %c0_i32_1 = arith.constant 0 : i32
    %c0_i32_2 = arith.constant 0 : i32
    return %c0_i32, %c0_i32_0, %c0_i32_1 : i32, i32, i32
  }
  func.func @transform_3(%arg0: i32) -> (i32, i32) {
    %c0_i32 = arith.constant 0 : i32
    %c0_i32_0 = arith.constant 0 : i32
    return %arg0, %c0_i32 : i32, i32
  }
}

</mosaic_0001>

<llo_original>
// kernel: tpu_custom_call.1
$region0: #{tpu_custom_call.1}
  #allocation0 [shape = 'u32[]', space=smem, size = 0x4, offset = 0x4, fixed_abs, tag = 'smem constant byte address 0x4 - core index']
  #allocation1 [shape = 'u32[144,128]{1,0:T(1,128)}', space=vmem, size = 0x12000, scoped, tag = 'internal scratch']
  %s0 = inlined_call_operand.vmem [shape: f32[512,32], index: 0, kind: input, shape index: {}]
  %s1 = inlined_call_operand.vmem [shape: f32[3,32,32], index: 1, kind: input, shape index: {}]
  %s2 = inlined_call_operand.vmem [shape: f32[3,1,32], index: 2, kind: input, shape index: {}]
  %s3 = inlined_call_operand.vmem [shape: f32[512,32], index: 3, kind: output, shape index: {}]
  %s4 = sld [smem:[#allocation0]]
  $region45: #{tpu_custom_call.1} parent=0
    _
  %s6 = ssub.s32 1, %s4
  %s7 = scalar_select 0, %s6, %s4
  loop: start=0, step=1, limit=10
  $region2: #{tpu_custom_call.1} parent=0 // loop_pre_header
    _
  $region3: #{tpu_custom_call.1} parent=0 // loop_header
    %s9 = sphi 0, %s13
    %p10 = scmp.ge.s32.totalorder %s9, 10
    %s19 = sphi 0, %s21
    %s22 = sphi 0, %s19
    %s23 = sphi 0, %s22
    %s39 = sphi 0, %s23
    %s43 = sphi 0, %s43
    %s45 = sphi 0, %s43
    %s46 = sphi 0, %s45
    %s60 = sphi 0, %s46
    %s64 = sphi 0, %s64
    %s66 = sphi 0, %s64
    %s67 = sphi 0, %s66
    %s81 = sphi 0, %s67
    %s87 = sphi 0, %s89
    %s90 = sphi 0, %s87
    %s91 = sphi 0, %s90
    %s107 = sphi 0, %s91
  $region4: #{tpu_custom_call.1} parent=0 // loop_header_branch
    %12 = sbr.rel (%p10) target = $region8
  $region5: #{tpu_custom_call.1} parent=0 // loop_body
    %s14 = ssub.s32 %s9, 1
    %s15 = ssub.s32 %s9, 2
    %s16 = sadd.s32 %s9, 1
    %s17 = ssub.s32 %s9, %s16
    %p18 = scmp.eq.s32.totalorder %s17, 0
    %s20 = sadd.s32 %s19, 1
    %s21 = scalar_select %p18, %s19, %s20
    %p24 = pneg %p18
    %p25 = scmp.eq.s32.totalorder %s9, 7
    %p26 = por %p24, %p25
    %p27 = scmp.ne.s32.totalorder %s19, %s22
    %p28 = scmp.eq.s32.totalorder %s9, 0
    %p29 = por %p27, %p28
    %p30 = scmp.ne.s32.totalorder %s19, %s22
    %p31 = scmp.eq.s32.totalorder %s14, 7
    %p32 = por %p30, %p31
    %p33 = scmp.ne.s32.totalorder %s22, %s23
    %p34 = scmp.eq.s32.totalorder %s14, 0
    %p35 = por %p33, %p34
    %p36 = scmp.ne.s32.totalorder %s22, %s23
    %p37 = scmp.eq.s32.totalorder %s15, 7
    %p38 = por %p36, %p37
    %p40 = scmp.ne.s32.totalorder %s23, %s39
    %p41 = scmp.eq.s32.totalorder %s15, 0
    %p42 = por %p40, %p41
    %s44 = sadd.s32 %s43, 1
    %p47 = scmp.eq.s32.totalorder %s9, 7
    %p48 = scmp.ne.s32.totalorder %s43, %s45
    %p49 = scmp.eq.s32.totalorder %s9, 0
    %p50 = por %p48, %p49
    %p51 = scmp.ne.s32.totalorder %s43, %s45
    %p52 = scmp.eq.s32.totalorder %s14, 7
    %p53 = por %p51, %p52
    %p54 = scmp.ne.s32.totalorder %s45, %s46
    %p55 = scmp.eq.s32.totalorder %s14, 0
    %p56 = por %p54, %p55
    %p57 = scmp.ne.s32.totalorder %s45, %s46
    %p58 = scmp.eq.s32.totalorder %s15, 7
    %p59 = por %p57, %p58
    %p61 = scmp.ne.s32.totalorder %s46, %s60
    %p62 = scmp.eq.s32.totalorder %s15, 0
    %p63 = por %p61, %p62
    %s65 = sadd.s32 %s64, 1
    %p68 = scmp.eq.s32.totalorder %s9, 7
    %p69 = scmp.ne.s32.totalorder %s64, %s66
    %p70 = scmp.eq.s32.totalorder %s9, 0
    %p71 = por %p69, %p70
    %p72 = scmp.ne.s32.totalorder %s64, %s66
    %p73 = scmp.eq.s32.totalorder %s14, 7
    %p74 = por %p72, %p73
    %p75 = scmp.ne.s32.totalorder %s66, %s67
    %p76 = scmp.eq.s32.totalorder %s14, 0
    %p77 = por %p75, %p76
    %p78 = scmp.ne.s32.totalorder %s66, %s67
    %p79 = scmp.eq.s32.totalorder %s15, 7
    %p80 = por %p78, %p79
    %p82 = scmp.ne.s32.totalorder %s67, %s81
    %p83 = scmp.eq.s32.totalorder %s15, 0
    %p84 = por %p82, %p83
    %s85 = ssub.s32 %s9, %s16
    %p86 = scmp.eq.s32.totalorder %s85, 0
    %s88 = sadd.s32 %s87, 1
    %s89 = scalar_select %p86, %s87, %s88
    %p92 = pneg %p86
    %p93 = scmp.eq.s32.totalorder %s9, 7
    %p94 = por %p92, %p93
    %p95 = scmp.ne.s32.totalorder %s87, %s90
    %p96 = scmp.eq.s32.totalorder %s9, 0
    %p97 = por %p95, %p96
    %p98 = scmp.ne.s32.totalorder %s87, %s90
    %p99 = scmp.eq.s32.totalorder %s14, 7
    %p100 = por %p98, %p99
    %p101 = scmp.ne.s32.totalorder %s90, %s91
    %p102 = scmp.eq.s32.totalorder %s14, 0
    %p103 = por %p101, %p102
    %p104 = scmp.ne.s32.totalorder %s90, %s91
    %p105 = scmp.eq.s32.totalorder %s15, 7
    %p106 = por %p104, %p105
    %p108 = scmp.ne.s32.totalorder %s91, %s107
    %p109 = scmp.eq.s32.totalorder %s15, 0
    %p110 = por %p108, %p109
    %p111 = scmp.le.s32.totalorder 1, %s9
    %p112 = scmp.lt.s32.totalorder %s9, 9
    %p113 = pnand %p111, %p112
    %p114 = pneg %p113
    // Predicated region
    $region9: #{tpu_custom_call.1} parent=5 // pred_check
      _
    $region10: #{tpu_custom_call.1} parent=5 // pred_check_branch
      %116 = sbr.rel (%p113) target = $region12
    $region11: #{tpu_custom_call.1} parent=5 // pred_region
      %s117 = ssub.s32 %s9, 1
      // Predicated region
      $region13: #{tpu_custom_call.1} parent=11 // pred_check
        %p118 = pneg %p56
      $region14: #{tpu_custom_call.1} parent=11 // pred_check_branch
        %120 = sbr.rel (%p118) target = $region16
      $region15: #{tpu_custom_call.1} parent=11 // pred_region
        _
      $region16: #{tpu_custom_call.1} parent=11 // pred_fallthru
        _
      // Predicated region
      $region17: #{tpu_custom_call.1} parent=11 // pred_check
        %p121 = pneg %p77
      $region18: #{tpu_custom_call.1} parent=11 // pred_check_branch
        %123 = sbr.rel (%p121) target = $region20
      $region19: #{tpu_custom_call.1} parent=11 // pred_region
        _
      $region20: #{tpu_custom_call.1} parent=11 // pred_fallthru
        _
    $region12: #{tpu_custom_call.1} parent=5 // pred_fallthru
      _
    %p124 = scmp.lt.s32.totalorder %s9, 8
    // Predicated region
    $region21: #{tpu_custom_call.1} parent=5 // pred_check
      %p125 = pneg %p124
    $region22: #{tpu_custom_call.1} parent=5 // pred_check_branch
      %127 = sbr.rel (%p125) target = $region24
    $region23: #{tpu_custom_call.1} parent=5 // pred_region
      // Predicated region
      $region25: #{tpu_custom_call.1} parent=23 // pred_check
        %p128 = pneg %p29
      $region26: #{tpu_custom_call.1} parent=23 // pred_check_branch
        %130 = sbr.rel (%p128) target = $region28
      $region27: #{tpu_custom_call.1} parent=23 // pred_region
        %s131 = smul.u32 8, %s9
        %p132 = scmp.lt.s32.totalorder %s131, 63
        %s133 = scalar_select %p132, %s131, 63
        %s134 = smul.addr %s133, 8
        %s135 = scalar_lea.vmem %s0, %s134
        %s136 = smul.u32 8, %s9
      $region28: #{tpu_custom_call.1} parent=23 // pred_fallthru
        _
    $region24: #{tpu_custom_call.1} parent=5 // pred_fallthru
      _
    %p137 = scmp.le.s32.totalorder 1, %s9
    %p138 = scmp.lt.s32.totalorder %s9, 9
    %p139 = pnand %p137, %p138
    %p140 = pneg %p139
    // Predicated region
    $region29: #{tpu_custom_call.1} parent=5 // pred_check
      _
    $region30: #{tpu_custom_call.1} parent=5 // pred_check_branch
      %142 = sbr.rel (%p139) target = $region32
    $region31: #{tpu_custom_call.1} parent=5 // pred_region
      %s143 = ssub.s32 %s9, 1
      %s144 = smul.u32 8, %s14
      %p145 = scmp.lt.s32.totalorder %s144, 63
      %s146 = scalar_select %p145, %s144, 63
      %s147 = smul.addr %s146, 8
      %s148 = scalar_lea.vmem %s0, %s147
      %p149 = pneg %p35
      %p150 = pneg %p32
      %p151 = pneg %p56
      %p152 = pneg %p53
      %p153 = pneg %p77
      %p154 = pneg %p74
      %p155 = pneg %p103
      %p156 = pneg %p100
      %s157 = smul.u32 8, %s14
      %p158 = scmp.lt.s32.totalorder %s157, 63
      %s159 = scalar_select %p158, %s157, 63
      %s160 = smul.addr %s159, 8
      %s161 = scalar_lea.vmem %s3, %s160
      %s162 = smul.u32 8, %s14
      %p163 = scmp.lt.s32.totalorder %s162, 63
      %s164 = scalar_select %p163, %s162, 63
      %s165 = smul.addr %s164, 8
      %s166 = scalar_lea.vmem %s0, %s165
      %s167 = smul.u32 8, %s14
      %s168 = smul.u32 8, %s14
      %p169 = scmp.lt.s32.totalorder %s168, 63
      %s170 = scalar_select %p169, %s168, 63
      %s171 = smul.addr %s170, 8
      %s172 = scalar_lea.vmem %s3, %s171
      %s173 = smul.u32 8, %s14
      %v174 = vld [vmem:[%s166] sm:$0xff]
      %v175 = vld [vmem:[%s166 + $0x8] sm:$0xff]
      %v176 = vld [vmem:[%s166 + $0x10] sm:$0xff]
      %v177 = vld [vmem:[%s166 + $0x18] sm:$0xff]
      %v178 = vld [vmem:[%s166 + $0x20] sm:$0xff]
      %v179 = vld [vmem:[%s166 + $0x28] sm:$0xff]
      %v180 = vld [vmem:[%s166 + $0x30] sm:$0xff]
      %v181 = vld [vmem:[%s166 + $0x38] sm:$0xff]
      %v182 = vld [vmem:[%s1] sm:$0xff]
      %v183 = vld [vmem:[%s1 + $0x8] sm:$0xff]
      %v184 = vld [vmem:[%s1 + $0x10] sm:$0xff]
      %v185 = vld [vmem:[%s1 + $0x18] sm:$0xff]
      %v186 = vld [vmem:[%s2] sm:$0x1]
      %v188 = vlaneseq
      %v189 = vshrl.u32 %v188, 7
      %v190 = vsub.s32 0, %v189
      %v191 = vrot.slane %v186, %v190
      %vm193 = vcmask 261120
      %v195 = vsel %vm193, %v174, 0
      %v198 = vsel %vm193, %v175, 0
      %v201 = vsel %vm193, %v176, 0
      %v204 = vsel %vm193, %v177, 0
      %v207 = vsel %vm193, %v178, 0
      %v210 = vsel %vm193, %v179, 0
      %v213 = vsel %vm193, %v180, 0
      %v216 = vsel %vm193, %v181, 0
      %218 = vmatprep.subr.mxu0 0.0
      %219 = vmatpush1.msra.mxu0 0.0
      %220 = vmatprep.subr.mxu0 0.0
      %221 = vmatpush1.msra.mxu0 0.0
      %222 = vmatprep.subr.mxu0 0.0
      %223 = vmatpush1.msra.mxu0 0.0
      %224 = vmatprep.subr.mxu0 0.0
      %225 = vmatpush1.msra.mxu0 0.0
      %226 = vmatprep.subr.mxu0 0.0
      %227 = vmatpush1.msra.mxu0 0.0
      %228 = vmatprep.subr.mxu0 0.0
      %229 = vmatpush1.msra.mxu0 0.0
      %230 = vmatprep.subr.mxu0 0.0
      %231 = vmatpush1.msra.mxu0 0.0
      %232 = vmatprep.subr.mxu0 0.0
      %233 = vmatpush1.msra.mxu0 0.0
      %234 = vmatprep.subr.mxu0 0.0
      %235 = vmatpush1.msra.mxu0 0.0
      %236 = vmatprep.subr.mxu0 0.0
      %237 = vmatpush1.msra.mxu0 0.0
      %238 = vmatprep.subr.mxu0 0.0
      %239 = vmatpush1.msra.mxu0 0.0
      %240 = vmatprep.subr.mxu0 0.0
      %241 = vmatpush1.msra.mxu0 0.0
      %242 = vmatprep.subr.mxu0 0.0
      %243 = vmatpush1.msra.mxu0 %v185
      %244 = vmatprep.subr.mxu0 0.0
      %245 = vmatpush1.msra.mxu0 %v184
      %246 = vmatprep.subr.mxu0 0.0
      %247 = vmatpush1.msra.mxu0 %v183
      %248 = vmatprep.subr.mxu0 0.0
      %249 = vmatpush1.msra.mxu0 %v182
      %250 = vmatprep.subr.mxu0 0.0
      %251 = vmatpush2.msra.mxu0 0.0
      %252 = vmatprep.subr.mxu0 0.0
      %253 = vmatpush2.msra.mxu0 0.0
      %254 = vmatprep.subr.mxu0 0.0
      %255 = vmatpush2.msra.mxu0 0.0
      %256 = vmatprep.subr.mxu0 0.0
      %257 = vmatpush2.msra.mxu0 0.0
      %258 = vmatprep.subr.mxu0 0.0
      %259 = vmatpush2.msra.mxu0 0.0
      %260 = vmatprep.subr.mxu0 0.0
      %261 = vmatpush2.msra.mxu0 0.0
      %262 = vmatprep.subr.mxu0 0.0
      %263 = vmatpush2.msra.mxu0 0.0
      %264 = vmatprep.subr.mxu0 0.0
      %265 = vmatpush2.msra.mxu0 0.0
      %266 = vmatprep.subr.mxu0 0.0
      %267 = vmatpush2.msra.mxu0 0.0
      %268 = vmatprep.subr.mxu0 0.0
      %269 = vmatpush2.msra.mxu0 0.0
      %270 = vmatprep.subr.mxu0 0.0
      %271 = vmatpush2.msra.mxu0 0.0
      %272 = vmatprep.subr.mxu0 0.0
      %273 = vmatpush2.msra.mxu0 0.0
      %274 = vmatprep.subr.mxu0 0.0
      %275 = vmatpush2.msra.mxu0 0.0
      %276 = vmatprep.subr.mxu0 0.0
      %277 = vmatpush2.msra.mxu0 0.0
      %278 = vmatprep.subr.mxu0 0.0
      %279 = vmatpush2.msra.mxu0 0.0
      %280 = vmatprep.subr.mxu0 0.0
      %281 = vmatpush2.msra.mxu0 0.0
      %282 = vmatprep.mubr.f32.mxu0 0.0
      %283 = vmatmul.mubr.f32.gmra.mxu0 %v195
      %v284 = vpop.f32.mrf.mxu0
      %v285 = vadd.f32 %v191, %v284
      %v286 = vpop.f32.mrf.mxu0
      %287 = vmatprep.mubr.f32.mxu0 0.0
      %288 = vmatmul.mubr.f32.gmra.mxu0 %v198
      %v289 = vpop.f32.mrf.mxu0
      %v290 = vadd.f32 %v191, %v289
      %v291 = vpop.f32.mrf.mxu0
      %292 = vmatprep.mubr.f32.mxu0 0.0
      %293 = vmatmul.mubr.f32.gmra.mxu0 %v201
      %v294 = vpop.f32.mrf.mxu0
      %v295 = vadd.f32 %v191, %v294
      %v296 = vpop.f32.mrf.mxu0
      %297 = vmatprep.mubr.f32.mxu0 0.0
      %298 = vmatmul.mubr.f32.gmra.mxu0 %v204
      %v299 = vpop.f32.mrf.mxu0
      %v300 = vadd.f32 %v191, %v299
      %v301 = vpop.f32.mrf.mxu0
      %302 = vmatprep.mubr.f32.mxu0 0.0
      %303 = vmatmul.mubr.f32.gmra.mxu0 %v207
      %v304 = vpop.f32.mrf.mxu0
      %v305 = vadd.f32 %v191, %v304
      %v306 = vpop.f32.mrf.mxu0
      %307 = vmatprep.mubr.f32.mxu0 0.0
      %308 = vmatmul.mubr.f32.gmra.mxu0 %v210
      %v309 = vpop.f32.mrf.mxu0
      %v310 = vadd.f32 %v191, %v309
      %v311 = vpop.f32.mrf.mxu0
      %312 = vmatprep.mubr.f32.mxu0 0.0
      %313 = vmatmul.mubr.f32.gmra.mxu0 %v213
      %v314 = vpop.f32.mrf.mxu0
      %v315 = vadd.f32 %v191, %v314
      %v316 = vpop.f32.mrf.mxu0
      %317 = vmatprep.mubr.f32.mxu0 0.0
      %318 = vmatmul.mubr.f32.gmra.mxu0 %v216
      %v319 = vpop.f32.mrf.mxu0
      %v320 = vadd.f32 %v191, %v319
      %v321 = vpop.f32.mrf.mxu0
      %322 = vdwg.mxu0
      %v323 = vmul.f32 %v285, 0.1
      %v324 = vmul.f32 %v290, 0.1
      %v325 = vmul.f32 %v295, 0.1
      %v326 = vmul.f32 %v300, 0.1
      %v327 = vmul.f32 %v305, 0.1
      %v328 = vmul.f32 %v310, 0.1
      %v329 = vmul.f32 %v315, 0.1
      %v330 = vmul.f32 %v320, 0.1
      %v331 = vmax.f32 %v285, %v323
      %v332 = vmax.f32 %v290, %v324
      %v333 = vmax.f32 %v295, %v325
      %v334 = vmax.f32 %v300, %v326
      %v335 = vmax.f32 %v305, %v327
      %v336 = vmax.f32 %v310, %v328
      %v337 = vmax.f32 %v315, %v329
      %v338 = vmax.f32 %v320, %v330
      %s339 = scalar_lea.vmem %s1, 32
      %v340 = vld [vmem:[%s339] sm:$0xff]
      %v341 = vld [vmem:[%s339 + $0x8] sm:$0xff]
      %v342 = vld [vmem:[%s339 + $0x10] sm:$0xff]
      %v343 = vld [vmem:[%s339 + $0x18] sm:$0xff]
      %s344 = scalar_lea.vmem %s2, 1
      %v345 = vld [vmem:[%s344] sm:$0x1]
      %v347 = vlaneseq
      %v348 = vshrl.u32 %v347, 7
      %v349 = vsub.s32 0, %v348
      %v350 = vrot.slane %v345, %v349
      %v353 = vsel %vm193, %v331, 0
      %v356 = vsel %vm193, %v332, 0
      %v359 = vsel %vm193, %v333, 0
      %v362 = vsel %vm193, %v334, 0
      %v365 = vsel %vm193, %v335, 0
      %v368 = vsel %vm193, %v336, 0
      %v371 = vsel %vm193, %v337, 0
      %v374 = vsel %vm193, %v338, 0
      %376 = vmatprep.subr.mxu0 0.0
      %377 = vmatpush1.msra.mxu0 0.0
      %378 = vmatprep.subr.mxu0 0.0
      %379 = vmatpush1.msra.mxu0 0.0
      %380 = vmatprep.subr.mxu0 0.0
      %381 = vmatpush1.msra.mxu0 0.0
      %382 = vmatprep.subr.mxu0 0.0
      %383 = vmatpush1.msra.mxu0 0.0
      %384 = vmatprep.subr.mxu0 0.0
      %385 = vmatpush1.msra.mxu0 0.0
      %386 = vmatprep.subr.mxu0 0.0
      %387 = vmatpush1.msra.mxu0 0.0
      %388 = vmatprep.subr.mxu0 0.0
      %389 = vmatpush1.msra.mxu0 0.0
      %390 = vmatprep.subr.mxu0 0.0
      %391 = vmatpush1.msra.mxu0 0.0
      %392 = vmatprep.subr.mxu0 0.0
      %393 = vmatpush1.msra.mxu0 0.0
      %394 = vmatprep.subr.mxu0 0.0
      %395 = vmatpush1.msra.mxu0 0.0
      %396 = vmatprep.subr.mxu0 0.0
      %397 = vmatpush1.msra.mxu0 0.0
      %398 = vmatprep.subr.mxu0 0.0
      %399 = vmatpush1.msra.mxu0 0.0
      %400 = vmatprep.subr.mxu0 0.0
      %401 = vmatpush1.msra.mxu0 %v343
      %402 = vmatprep.subr.mxu0 0.0
      %403 = vmatpush1.msra.mxu0 %v342
      %404 = vmatprep.subr.mxu0 0.0
      %405 = vmatpush1.msra.mxu0 %v341
      %406 = vmatprep.subr.mxu0 0.0
      %407 = vmatpush1.msra.mxu0 %v340
      %408 = vmatprep.subr.mxu0 0.0
      %409 = vmatpush2.msra.mxu0 0.0
      %410 = vmatprep.subr.mxu0 0.0
      %411 = vmatpush2.msra.mxu0 0.0
      %412 = vmatprep.subr.mxu0 0.0
      %413 = vmatpush2.msra.mxu0 0.0
      %414 = vmatprep.subr.mxu0 0.0
      %415 = vmatpush2.msra.mxu0 0.0
      %416 = vmatprep.subr.mxu0 0.0
      %417 = vmatpush2.msra.mxu0 0.0
      %418 = vmatprep.subr.mxu0 0.0
      %419 = vmatpush2.msra.mxu0 0.0
      %420 = vmatprep.subr.mxu0 0.0
      %421 = vmatpush2.msra.mxu0 0.0
      %422 = vmatprep.subr.mxu0 0.0
      %423 = vmatpush2.msra.mxu0 0.0
      %424 = vmatprep.subr.mxu0 0.0
      %425 = vmatpush2.msra.mxu0 0.0
      %426 = vmatprep.subr.mxu0 0.0
      %427 = vmatpush2.msra.mxu0 0.0
      %428 = vmatprep.subr.mxu0 0.0
      %429 = vmatpush2.msra.mxu0 0.0
      %430 = vmatprep.subr.mxu0 0.0
      %431 = vmatpush2.msra.mxu0 0.0
      %432 = vmatprep.subr.mxu0 0.0
      %433 = vmatpush2.msra.mxu0 0.0
      %434 = vmatprep.subr.mxu0 0.0
      %435 = vmatpush2.msra.mxu0 0.0
      %436 = vmatprep.subr.mxu0 0.0
      %437 = vmatpush2.msra.mxu0 0.0
      %438 = vmatprep.subr.mxu0 0.0
      %439 = vmatpush2.msra.mxu0 0.0
      %440 = vmatprep.mubr.f32.mxu0 0.0
      %441 = vmatmul.mubr.f32.gmra.mxu0 %v353
      %v442 = vpop.f32.mrf.mxu0
      %v443 = vadd.f32 %v350, %v442
      %v444 = vpop.f32.mrf.mxu0
      %445 = vmatprep.mubr.f32.mxu0 0.0
      %446 = vmatmul.mubr.f32.gmra.mxu0 %v356
      %v447 = vpop.f32.mrf.mxu0
      %v448 = vadd.f32 %v350, %v447
      %v449 = vpop.f32.mrf.mxu0
      %450 = vmatprep.mubr.f32.mxu0 0.0
      %451 = vmatmul.mubr.f32.gmra.mxu0 %v359
      %v452 = vpop.f32.mrf.mxu0
      %v453 = vadd.f32 %v350, %v452
      %v454 = vpop.f32.mrf.mxu0
      %455 = vmatprep.mubr.f32.mxu0 0.0
      %456 = vmatmul.mubr.f32.gmra.mxu0 %v362
      %v457 = vpop.f32.mrf.mxu0
      %v458 = vadd.f32 %v350, %v457
      %v459 = vpop.f32.mrf.mxu0
      %460 = vmatprep.mubr.f32.mxu0 0.0
      %461 = vmatmul.mubr.f32.gmra.mxu0 %v365
      %v462 = vpop.f32.mrf.mxu0
      %v463 = vadd.f32 %v350, %v462
      %v464 = vpop.f32.mrf.mxu0
      %465 = vmatprep.mubr.f32.mxu0 0.0
      %466 = vmatmul.mubr.f32.gmra.mxu0 %v368
      %v467 = vpop.f32.mrf.mxu0
      %v468 = vadd.f32 %v350, %v467
      %v469 = vpop.f32.mrf.mxu0
      %470 = vmatprep.mubr.f32.mxu0 0.0
      %471 = vmatmul.mubr.f32.gmra.mxu0 %v371
      %v472 = vpop.f32.mrf.mxu0
      %v473 = vadd.f32 %v350, %v472
      %v474 = vpop.f32.mrf.mxu0
      %475 = vmatprep.mubr.f32.mxu0 0.0
      %476 = vmatmul.mubr.f32.gmra.mxu0 %v374
      %v477 = vpop.f32.mrf.mxu0
      %v478 = vadd.f32 %v350, %v477
      %v479 = vpop.f32.mrf.mxu0
      %480 = vdwg.mxu0
      %v481 = vmul.f32 %v443, 0.1
      %v482 = vmul.f32 %v448, 0.1
      %v483 = vmul.f32 %v453, 0.1
      %v484 = vmul.f32 %v458, 0.1
      %v485 = vmul.f32 %v463, 0.1
      %v486 = vmul.f32 %v468, 0.1
      %v487 = vmul.f32 %v473, 0.1
      %v488 = vmul.f32 %v478, 0.1
      %v489 = vmax.f32 %v443, %v481
      %v490 = vmax.f32 %v448, %v482
      %v491 = vmax.f32 %v453, %v483
      %v492 = vmax.f32 %v458, %v484
      %v493 = vmax.f32 %v463, %v485
      %v494 = vmax.f32 %v468, %v486
      %v495 = vmax.f32 %v473, %v487
      %v496 = vmax.f32 %v478, %v488
      %s497 = scalar_lea.vmem %s1, 64
      %v498 = vld [vmem:[%s497] sm:$0xff]
      %v499 = vld [vmem:[%s497 + $0x8] sm:$0xff]
      %v500 = vld [vmem:[%s497 + $0x10] sm:$0xff]
      %v501 = vld [vmem:[%s497 + $0x18] sm:$0xff]
      %s502 = scalar_lea.vmem %s2, 2
      %v503 = vld [vmem:[%s502] sm:$0x1]
      %v505 = vlaneseq
      %v506 = vshrl.u32 %v505, 7
      %v507 = vsub.s32 0, %v506
      %v508 = vrot.slane %v503, %v507
      %v511 = vsel %vm193, %v489, 0
      %v514 = vsel %vm193, %v490, 0
      %v517 = vsel %vm193, %v491, 0
      %v520 = vsel %vm193, %v492, 0
      %v523 = vsel %vm193, %v493, 0
      %v526 = vsel %vm193, %v494, 0
      %v529 = vsel %vm193, %v495, 0
      %v532 = vsel %vm193, %v496, 0
      %534 = vmatprep.subr.mxu0 0.0
      %535 = vmatpush1.msra.mxu0 0.0
      %536 = vmatprep.subr.mxu0 0.0
      %537 = vmatpush1.msra.mxu0 0.0
      %538 = vmatprep.subr.mxu0 0.0
      %539 = vmatpush1.msra.mxu0 0.0
      %540 = vmatprep.subr.mxu0 0.0
      %541 = vmatpush1.msra.mxu0 0.0
      %542 = vmatprep.subr.mxu0 0.0
      %543 = vmatpush1.msra.mxu0 0.0
      %544 = vmatprep.subr.mxu0 0.0
      %545 = vmatpush1.msra.mxu0 0.0
      %546 = vmatprep.subr.mxu0 0.0
      %547 = vmatpush1.msra.mxu0 0.0
      %548 = vmatprep.subr.mxu0 0.0
      %549 = vmatpush1.msra.mxu0 0.0
      %550 = vmatprep.subr.mxu0 0.0
      %551 = vmatpush1.msra.mxu0 0.0
      %552 = vmatprep.subr.mxu0 0.0
      %553 = vmatpush1.msra.mxu0 0.0
      %554 = vmatprep.subr.mxu0 0.0
      %555 = vmatpush1.msra.mxu0 0.0
      %556 = vmatprep.subr.mxu0 0.0
      %557 = vmatpush1.msra.mxu0 0.0
      %558 = vmatprep.subr.mxu0 0.0
      %559 = vmatpush1.msra.mxu0 %v501
      %560 = vmatprep.subr.mxu0 0.0
      %561 = vmatpush1.msra.mxu0 %v500
      %562 = vmatprep.subr.mxu0 0.0
      %563 = vmatpush1.msra.mxu0 %v499
      %564 = vmatprep.subr.mxu0 0.0
      %565 = vmatpush1.msra.mxu0 %v498
      %566 = vmatprep.subr.mxu0 0.0
      %567 = vmatpush2.msra.mxu0 0.0
      %568 = vmatprep.subr.mxu0 0.0
      %569 = vmatpush2.msra.mxu0 0.0
      %570 = vmatprep.subr.mxu0 0.0
      %571 = vmatpush2.msra.mxu0 0.0
      %572 = vmatprep.subr.mxu0 0.0
      %573 = vmatpush2.msra.mxu0 0.0
      %574 = vmatprep.subr.mxu0 0.0
      %575 = vmatpush2.msra.mxu0 0.0
      %576 = vmatprep.subr.mxu0 0.0
      %577 = vmatpush2.msra.mxu0 0.0
      %578 = vmatprep.subr.mxu0 0.0
      %579 = vmatpush2.msra.mxu0 0.0
      %580 = vmatprep.subr.mxu0 0.0
      %581 = vmatpush2.msra.mxu0 0.0
      %582 = vmatprep.subr.mxu0 0.0
      %583 = vmatpush2.msra.mxu0 0.0
      %584 = vmatprep.subr.mxu0 0.0
      %585 = vmatpush2.msra.mxu0 0.0
      %586 = vmatprep.subr.mxu0 0.0
      %587 = vmatpush2.msra.mxu0 0.0
      %588 = vmatprep.subr.mxu0 0.0
      %589 = vmatpush2.msra.mxu0 0.0
      %590 = vmatprep.subr.mxu0 0.0
      %591 = vmatpush2.msra.mxu0 0.0
      %592 = vmatprep.subr.mxu0 0.0
      %593 = vmatpush2.msra.mxu0 0.0
      %594 = vmatprep.subr.mxu0 0.0
      %595 = vmatpush2.msra.mxu0 0.0
      %596 = vmatprep.subr.mxu0 0.0
      %597 = vmatpush2.msra.mxu0 0.0
      %598 = vmatprep.mubr.f32.mxu0 0.0
      %599 = vmatmul.mubr.f32.gmra.mxu0 %v511
      %v600 = vpop.f32.mrf.mxu0
      %v601 = vadd.f32 %v508, %v600
      %v602 = vpop.f32.mrf.mxu0
      %603 = vmatprep.mubr.f32.mxu0 0.0
      %604 = vmatmul.mubr.f32.gmra.mxu0 %v514
      %v605 = vpop.f32.mrf.mxu0
      %v606 = vadd.f32 %v508, %v605
      %v607 = vpop.f32.mrf.mxu0
      %608 = vmatprep.mubr.f32.mxu0 0.0
      %609 = vmatmul.mubr.f32.gmra.mxu0 %v517
      %v610 = vpop.f32.mrf.mxu0
      %v611 = vadd.f32 %v508, %v610
      %v612 = vpop.f32.mrf.mxu0
      %613 = vmatprep.mubr.f32.mxu0 0.0
      %614 = vmatmul.mubr.f32.gmra.mxu0 %v520
      %v615 = vpop.f32.mrf.mxu0
      %v616 = vadd.f32 %v508, %v615
      %v617 = vpop.f32.mrf.mxu0
      %618 = vmatprep.mubr.f32.mxu0 0.0
      %619 = vmatmul.mubr.f32.gmra.mxu0 %v523
      %v620 = vpop.f32.mrf.mxu0
      %v621 = vadd.f32 %v508, %v620
      %v622 = vpop.f32.mrf.mxu0
      %623 = vmatprep.mubr.f32.mxu0 0.0
      %624 = vmatmul.mubr.f32.gmra.mxu0 %v526
      %v625 = vpop.f32.mrf.mxu0
      %v626 = vadd.f32 %v508, %v625
      %v627 = vpop.f32.mrf.mxu0
      %628 = vmatprep.mubr.f32.mxu0 0.0
      %629 = vmatmul.mubr.f32.gmra.mxu0 %v529
      %v630 = vpop.f32.mrf.mxu0
      %v631 = vadd.f32 %v508, %v630
      %v632 = vpop.f32.mrf.mxu0
      %633 = vmatprep.mubr.f32.mxu0 0.0
      %634 = vmatmul.mubr.f32.gmra.mxu0 %v532
      %v635 = vpop.f32.mrf.mxu0
      %v636 = vadd.f32 %v508, %v635
      %v637 = vpop.f32.mrf.mxu0
      %638 = vdwg.mxu0
      %v639 = vadd.f32 %v601, %v174
      %v640 = vadd.f32 %v606, %v175
      %v641 = vadd.f32 %v611, %v176
      %v642 = vadd.f32 %v616, %v177
      %v643 = vadd.f32 %v621, %v178
      %v644 = vadd.f32 %v626, %v179
      %v645 = vadd.f32 %v631, %v180
      %v646 = vadd.f32 %v636, %v181
      %v647 = vmax.f32 %v639, 0.0
      %v648 = vmax.f32 %v640, 0.0
      %v649 = vmax.f32 %v641, 0.0
      %v650 = vmax.f32 %v642, 0.0
      %v651 = vmax.f32 %v643, 0.0
      %v652 = vmax.f32 %v644, 0.0
      %v653 = vmax.f32 %v645, 0.0
      %v654 = vmax.f32 %v646, 0.0
      %655 = vst.msk [vmem:[%s172] sm:$0xff] %vm193, %v647
      %656 = vst.msk [vmem:[%s172 + $0x8] sm:$0xff] %vm193, %v648
      %657 = vst.msk [vmem:[%s172 + $0x10] sm:$0xff] %vm193, %v649
      %658 = vst.msk [vmem:[%s172 + $0x18] sm:$0xff] %vm193, %v650
      %659 = vst.msk [vmem:[%s172 + $0x20] sm:$0xff] %vm193, %v651
      %660 = vst.msk [vmem:[%s172 + $0x28] sm:$0xff] %vm193, %v652
      %661 = vst.msk [vmem:[%s172 + $0x30] sm:$0xff] %vm193, %v653
      %662 = vst.msk [vmem:[%s172 + $0x38] sm:$0xff] %vm193, %v654
      %s663 = smul.u32 8, %s14
      %p664 = scmp.lt.s32.totalorder %s663, 63
      %s665 = scalar_select %p664, %s663, 63
      %s666 = smul.addr %s665, 8
      %s667 = scalar_lea.vmem %s3, %s666
      // Predicated region
      $region33: #{tpu_custom_call.1} parent=31 // pred_check
        %p668 = pneg %p100
      $region34: #{tpu_custom_call.1} parent=31 // pred_check_branch
        %670 = sbr.rel (%p668) target = $region36
      $region35: #{tpu_custom_call.1} parent=31 // pred_region
        %s671 = smul.u32 8, %s14
      $region36: #{tpu_custom_call.1} parent=31 // pred_fallthru
        _
    $region32: #{tpu_custom_call.1} parent=5 // pred_fallthru
      _
    %p672 = scmp.le.s32.totalorder 2, %s9
    // Predicated region
    $region37: #{tpu_custom_call.1} parent=5 // pred_check
      %p673 = pneg %p672
    $region38: #{tpu_custom_call.1} parent=5 // pred_check_branch
      %675 = sbr.rel (%p673) target = $region40
    $region39: #{tpu_custom_call.1} parent=5 // pred_region
      %s676 = ssub.s32 %s9, 2
      // Predicated region
      $region41: #{tpu_custom_call.1} parent=39 // pred_check
        %p677 = pneg %p106
      $region42: #{tpu_custom_call.1} parent=39 // pred_check_branch
        %679 = sbr.rel (%p677) target = $region44
      $region43: #{tpu_custom_call.1} parent=39 // pred_region
        %s680 = smul.u32 8, %s15
        %p681 = scmp.lt.s32.totalorder %s680, 63
        %s682 = scalar_select %p681, %s680, 63
        %s683 = smul.addr %s682, 8
        %s684 = scalar_lea.vmem %s3, %s683
      $region44: #{tpu_custom_call.1} parent=39 // pred_fallthru
        _
    $region40: #{tpu_custom_call.1} parent=5 // pred_fallthru
      _
  $region6: #{tpu_custom_call.1} parent=0 // loop_footer
    %s13 = sadd.s32 1, %s9
  $region7: #{tpu_custom_call.1} parent=0 // loop_footer_branch
    %8 = sbr.rel target = $region3
  $region8: #{tpu_custom_call.1} parent=0 // loop_exit
    _

</llo_original>
